<compile_context>
chip_gen: v7x
topology: tpu7x:2x2x1
jax: 0.10.0
libtpu: 0.0.40
codegen_flags: <defaults>
</compile_context>

<pallas_src>
import functools

import numpy as np
import jax
import jax.numpy as jnp
from jax import lax
from jax.experimental import pallas as pl
from jax.experimental.pallas import tpu as pltpu

_LANE = 128
_SUBLANE = 8
_ROWS_CHUNK = 64        # inner strip-mine chunk (rows of 128 voxels), multiple of 8
_ROW_GRANULE = _ROWS_CHUNK  # arrays padded only to this many rows (tiny pad)


def _round_up(x, m):
    return -(-x // m) * m


def _vmem_plan():
    """Per-generation VMEM limit + double-buffered input budget (bytes)."""
    cap = 64 * 1024 * 1024  # conservative default = v7x physical VMEM per TC
    try:
        info = pltpu.get_tpu_info()
        cap_attr = int(getattr(info, "vmem_capacity_bytes", 0))
        if cap_attr > 0:
            cap = cap_attr
    except Exception:
        pass
    limit = min((cap * 3) // 4, 96 * 1024 * 1024)   # v7x: 48 MiB, v5e/v6e: 96 MiB
    return limit, limit // 2


def _fault_loss_kernel(probs_ref, tgt_ref, unc_ref, out_ref, acc_ref, *,
                       steps, rows_chunk, n_rows_valid, need_mask):
    # grid = (parallel chunk, sequential step within chunk)
    p = pl.program_id(0)
    s = pl.program_id(1)

    @pl.when(s == 0)
    def _init():
        acc_ref[...] = jnp.zeros_like(acc_ref)

    num_classes, tile_rows, lane = probs_ref.shape
    n_chunks = tile_rows // rows_chunk
    tile_row0 = (p * steps + s) * tile_rows          # nominal global first row

    def _chunk(ci, carry):
        off = pl.multiple_of(ci * rows_chunk, rows_chunk)
        sl = pl.ds(off, rows_chunk)

        # First-index argmax over the (small) class axis, fully unrolled.
        # Lane-dense (rows_chunk, 128) slabs -> pure VPU work in vregs;
        # comparisons stay in the inputs' native dtype.
        p_best = probs_ref[0, sl, :]
        t_best = tgt_ref[0, sl, :]
        p_idx = jnp.zeros((rows_chunk, lane), jnp.int32)
        t_idx = jnp.zeros((rows_chunk, lane), jnp.int32)
        for c in range(1, num_classes):
            pc = probs_ref[c, sl, :]
            pm = pc > p_best            # strict '>' keeps the first index on ties
            p_best = jnp.where(pm, pc, p_best)
            p_idx = jnp.where(pm, c, p_idx)
            tc = tgt_ref[c, sl, :]
            tm = tc > t_best
            t_best = jnp.where(tm, tc, t_best)
            t_idx = jnp.where(tm, c, t_idx)

        wrong = (p_idx != t_idx).astype(jnp.float32)
        unc = unc_ref[sl, :].astype(jnp.float32)
        contrib = jnp.abs(wrong - unc)

        if need_mask:
            # Rows at/after n_rows_valid are out-of-bounds block reads (garbage)
            # or duplicated clamped tiles -> zero them (covers garbage unc too).
            rows = tile_row0 + off + lax.broadcasted_iota(
                jnp.int32, (rows_chunk, lane), 0)
            contrib = jnp.where(rows < n_rows_valid, contrib, 0.0)

        # Fold (rows_chunk,128) -> one (8,128) vreg with cross-vreg adds only
        # (no XLU), then accumulate into the tiny resident scratch.
        acc_ref[...] += contrib.reshape(
            rows_chunk // _SUBLANE, _SUBLANE, lane).sum(axis=0)
        return carry

    lax.fori_loop(0, n_chunks, _chunk, 0)

    @pl.when(s == steps - 1)
    def _finalize():
        out_ref[0] = acc_ref[...]     # full-vreg unmasked store, once per chunk


def fault_detector_loss(class_probs, unc_scores, targets, *, max_tile_rows=None):
    """class_probs/targets: [..., C] voxel grids, unc_scores: [...] -> scalar loss."""
    num_classes = class_probs.shape[-1]

    # Channels-first lane-dense layout; keep native dtypes (one unavoidable
    # transpose copy pass, minimum bytes moved).
    probs_cn = class_probs.reshape(-1, num_classes).T      # (C, N)
    tgt_cn = targets.reshape(-1, num_classes).T             # (C, N)
    unc_flat = unc_scores.reshape(-1)                       # (N,)
    n = unc_flat.shape[0]

    n_rows = _round_up(pl.cdiv(n, _LANE), _ROW_GRANULE)     # rows of 128 voxels
    n_pad = n_rows * _LANE
    if n_pad != n:
        # Tiny zero pad (< 8192 voxels): padded voxels have argmax(pred) ==
        # argmax(target) == 0 and unc == 0, so they contribute exactly 0.
        probs_cn = jnp.pad(probs_cn, ((0, 0), (0, n_pad - n)))
        tgt_cn = jnp.pad(tgt_cn, ((0, 0), (0, n_pad - n)))
        unc_flat = jnp.pad(unc_flat, (0, n_pad - n))
    probs_cn = probs_cn.reshape(num_classes, n_rows, _LANE)
    tgt_cn = tgt_cn.reshape(num_classes, n_rows, _LANE)
    unc_rows = unc_flat.reshape(n_rows, _LANE)

    # Tile sizing: as many 64-row granules as the per-generation VMEM budget
    # allows (double-buffered inputs), capped by what the input actually needs.
    vmem_limit, input_budget = _vmem_plan()
    bytes_per_row = 2 * _LANE * (
        (jnp.dtype(probs_cn.dtype).itemsize + jnp.dtype(tgt_cn.dtype).itemsize)
        * num_classes + jnp.dtype(unc_rows.dtype).itemsize)
    cap_rows = max(_ROWS_CHUNK,
                   (input_budget // bytes_per_row) // _ROWS_CHUNK * _ROWS_CHUNK)
    if max_tile_rows is not None:
        cap_rows = min(cap_rows,
                       max(_ROWS_CHUNK, max_tile_rows // _ROWS_CHUNK * _ROWS_CHUNK))
    tile_rows = min(n_rows, cap_rows)

    total_tiles = pl.cdiv(n_rows, tile_rows)
    num_par = 2 if total_tiles >= 2 else 1        # shard across v7x's 2 TCs
    steps = pl.cdiv(total_tiles, num_par)
    need_mask = (num_par * steps * tile_rows) != n_rows

    def _tile_idx(p, s):
        # Clamp so excess / ragged grid points still map to an in-bounds block;
        # their contribution is zeroed by the in-kernel row mask.
        return jnp.minimum(p * steps + s, total_tiles - 1)

    kernel = functools.partial(
        _fault_loss_kernel, steps=steps, rows_chunk=_ROWS_CHUNK,
        n_rows_valid=n_rows, need_mask=need_mask)

    partials = pl.pallas_call(
        kernel,
        out_shape=jax.ShapeDtypeStruct((num_par, _SUBLANE, _LANE), jnp.float32),
        grid=(num_par, steps),
        in_specs=[
            pl.BlockSpec((num_classes, tile_rows, _LANE),
                         lambda p, s: (0, _tile_idx(p, s), 0)),
            pl.BlockSpec((num_classes, tile_rows, _LANE),
                         lambda p, s: (0, _tile_idx(p, s), 0)),
            pl.BlockSpec((tile_rows, _LANE),
                         lambda p, s: (_tile_idx(p, s), 0)),
        ],
        out_specs=pl.BlockSpec((1, _SUBLANE, _LANE), lambda p, s: (p, 0, 0)),
        scratch_shapes=[pltpu.VMEM((_SUBLANE, _LANE), jnp.float32)],
        compiler_params=pltpu.CompilerParams(
            dimension_semantics=("parallel", "arbitrary"),
            vmem_limit_bytes=vmem_limit,
        ),
    )(probs_cn, tgt_cn, unc_rows)

    return jnp.sum(partials) / jnp.float32(n)


class GenericLoss:
    def __init__(self, alpha=1, lamda=1):
        self.smooth = 1e-08
        self.alpha = alpha
        self.lamda = lamda
        self.ignore_bg = False


class BaseFaultDetectorLoss(GenericLoss):
    """JAX/Pallas port of the PyTorch BaseFaultDetectorLoss forward pass."""

    def __init__(self):
        super().__init__()
        self._loss_fn = jax.jit(fault_detector_loss)

    def forward(self, class_probs, unc_scores, targets):
        return self._loss_fn(class_probs, unc_scores, targets)

    __call__ = forward


def _reference_loss(class_probs, unc_scores, targets):
    c = class_probs.shape[-1]
    preds = jnp.argmax(class_probs.reshape(-1, c), axis=-1)
    tgts = jnp.argmax(targets.reshape(-1, c), axis=-1)
    wrong = (preds != tgts).astype(jnp.float32)
    return jnp.mean(jnp.abs(wrong - unc_scores.reshape(-1).astype(jnp.float32)))


if __name__ == "__main__":
    key = jax.random.PRNGKey(0)
    k_probs, k_unc, k_tgt, k2, k3 = jax.random.split(key, 5)

    # Case 1: small f32 [B, H, W, C] voxel grid through the module interface.
    B, H, W, C = 2, 16, 16, 4
    class_probs = jax.nn.softmax(
        jax.random.normal(k_probs, (B, H, W, C), dtype=jnp.float32), axis=-1)
    unc_scores = jax.random.uniform(k_unc, (B, H, W), dtype=jnp.float32)
    labels = jax.random.randint(k_tgt, (B, H, W), 0, C)
    targets = jax.nn.one_hot(labels, C, dtype=jnp.float32)

    loss_mod = BaseFaultDetectorLoss()
    loss = jax.block_until_ready(loss_mod.forward(class_probs, unc_scores, targets))
    ref = _reference_loss(class_probs, unc_scores, targets)
    assert np.isfinite(float(loss))
    assert abs(float(loss) - float(ref)) < 2e-5, (float(loss), float(ref))

    # Case 2: bf16 inputs, non-multiple-of-128 voxel count, odd C (exercises the
    # native-dtype path and the zero-padded granule).
    B2, H2, W2, C2 = 2, 48, 80, 5
    kp2, ku2, kt2 = jax.random.split(k2, 3)
    cp2 = jax.nn.softmax(
        jax.random.normal(kp2, (B2, H2, W2, C2), jnp.float32), -1).astype(jnp.bfloat16)
    us2 = jax.random.uniform(ku2, (B2, H2, W2), dtype=jnp.float32).astype(jnp.bfloat16)
    tg2 = jax.nn.one_hot(jax.random.randint(kt2, (B2, H2, W2), 0, C2), C2,
                         dtype=jnp.bfloat16)
    loss2 = jax.block_until_ready(fault_detector_loss(cp2, us2, tg2))
    ref2 = _reference_loss(cp2, us2, tg2)
    assert abs(float(loss2) - float(ref2)) < 5e-5, (float(loss2), float(ref2))

    # Case 3: forced small tiles -> multi-tile grid, 2-way parallel split, odd
    # tile count (exercises clamped index_map + in-kernel OOB row masking).
    B3, H3, W3, C3 = 2, 96, 128, 3
    kp3, ku3, kt3 = jax.random.split(k3, 3)
    cp3 = jax.nn.softmax(jax.random.normal(kp3, (B3, H3, W3, C3), jnp.float32), -1)
    us3 = jax.random.uniform(ku3, (B3, H3, W3), dtype=jnp.float32)
    tg3 = jax.nn.one_hot(jax.random.randint(kt3, (B3, H3, W3), 0, C3), C3,
                         dtype=jnp.float32)
    loss3 = jax.block_until_ready(
        fault_detector_loss(cp3, us3, tg3, max_tile_rows=64))   # 3 tiles, P=2
    ref3 = _reference_loss(cp3, us3, tg3)
    assert abs(float(loss3) - float(ref3)) < 5e-5, (float(loss3), float(ref3))

    print("KERNEL_OK")
</pallas_src>

<mosaic_0001>
module attributes {stable_mosaic.version = 11 : i64} {
  func.func @_fault_loss_kernel(%arg0: i32, %arg1: i32, %arg2: memref<4x64x128xf32, #tpu.memory_space<vmem>>, %arg3: memref<4x64x128xf32, #tpu.memory_space<vmem>>, %arg4: memref<64x128xf32, #tpu.memory_space<vmem>>, %arg5: memref<1x8x128xf32, #tpu.memory_space<vmem>>, %arg6: memref<8x128xf32, #tpu.memory_space<vmem>>) attributes {dimension_semantics = [#tpu.dimension_semantics<parallel>, #tpu.dimension_semantics<arbitrary>], iteration_bounds = array<i64: 1, 1>, scalar_prefetch = 0 : i64, scratch_operands = 1 : i64, tpu.core_type = #tpu.core_type<tc>, window_params = [{transform_indices = @transform_0, window_bounds = array<i64: 4, 64, 128>}, {transform_indices = @transform_1, window_bounds = array<i64: 4, 64, 128>}, {transform_indices = @transform_2, window_bounds = array<i64: 64, 128>}, {transform_indices = @transform_3, window_bounds = array<i64: 1, 8, 128>}]} {
    %c0_i32 = arith.constant 0 : i32
    %0 = arith.cmpi eq, %arg1, %c0_i32 : i32
    %1 = arith.extui %0 : i1 to i32
    %c0_i32_0 = arith.constant 0 : i32
    %2 = arith.cmpi ne, %1, %c0_i32_0 : i32
    scf.if %2 {
      %cst_27 = arith.constant 0.000000e+00 : f32
      %68 = vector.broadcast %cst_27 : f32 to vector<8x128xf32>
      %c0_28 = arith.constant 0 : index
      %c0_29 = arith.constant 0 : index
      %69 = vector.load %arg6[%c0_28, %c0_29] : memref<8x128xf32, #tpu.memory_space<vmem>>, vector<8x128xf32>
      tpu.vector_store %arg6[%c0_28, %c0_29], %68 {strides = array<i32>} : memref<8x128xf32, #tpu.memory_space<vmem>>, vector<8x128xf32>,
    } else {
    }
    %c0_i32_1 = arith.constant 0 : i32
    %c64_i32 = arith.constant 64 : i32
    %3 = arith.muli %c0_i32_1, %c64_i32 : i32
    %4 = tpu.assume_multiple %3, 64 : i32
    %c0 = arith.constant 0 : index
    %5 = arith.index_cast %4 : i32 to index
    %c0_2 = arith.constant 0 : index
    %6 = vector.load %arg2[%c0, %5, %c0_2] : memref<4x64x128xf32, #tpu.memory_space<vmem>>, vector<1x64x128xf32>
    %7 = vector.shape_cast %6 : vector<1x64x128xf32> to vector<64x128xf32>
    %c0_3 = arith.constant 0 : index
    %8 = arith.index_cast %4 : i32 to index
    %c0_4 = arith.constant 0 : index
    %9 = vector.load %arg3[%c0_3, %8, %c0_4] : memref<4x64x128xf32, #tpu.memory_space<vmem>>, vector<1x64x128xf32>
    %10 = vector.shape_cast %9 : vector<1x64x128xf32> to vector<64x128xf32>
    %c0_i32_5 = arith.constant 0 : i32
    %11 = vector.broadcast %c0_i32_5 : i32 to vector<64x128xi32>
    %c0_i32_6 = arith.constant 0 : i32
    %12 = vector.broadcast %c0_i32_6 : i32 to vector<64x128xi32>
    %c1 = arith.constant 1 : index
    %13 = arith.index_cast %4 : i32 to index
    %c0_7 = arith.constant 0 : index
    %14 = vector.load %arg2[%c1, %13, %c0_7] : memref<4x64x128xf32, #tpu.memory_space<vmem>>, vector<1x64x128xf32>
    %15 = vector.shape_cast %14 : vector<1x64x128xf32> to vector<64x128xf32>
    %16 = arith.cmpf ogt, %15, %7 : vector<64x128xf32>
    %17 = arith.select %16, %15, %7 : vector<64x128xi1>, vector<64x128xf32>
    %c1_i32 = arith.constant 1 : i32
    %18 = vector.broadcast %c1_i32 : i32 to vector<64x128xi32>
    %19 = arith.select %16, %18, %11 : vector<64x128xi1>, vector<64x128xi32>
    %c1_8 = arith.constant 1 : index
    %20 = arith.index_cast %4 : i32 to index
    %c0_9 = arith.constant 0 : index
    %21 = vector.load %arg3[%c1_8, %20, %c0_9] : memref<4x64x128xf32, #tpu.memory_space<vmem>>, vector<1x64x128xf32>
    %22 = vector.shape_cast %21 : vector<1x64x128xf32> to vector<64x128xf32>
    %23 = arith.cmpf ogt, %22, %10 : vector<64x128xf32>
    %24 = arith.select %23, %22, %10 : vector<64x128xi1>, vector<64x128xf32>
    %c1_i32_10 = arith.constant 1 : i32
    %25 = vector.broadcast %c1_i32_10 : i32 to vector<64x128xi32>
    %26 = arith.select %23, %25, %12 : vector<64x128xi1>, vector<64x128xi32>
    %c2 = arith.constant 2 : index
    %27 = arith.index_cast %4 : i32 to index
    %c0_11 = arith.constant 0 : index
    %28 = vector.load %arg2[%c2, %27, %c0_11] : memref<4x64x128xf32, #tpu.memory_space<vmem>>, vector<1x64x128xf32>
    %29 = vector.shape_cast %28 : vector<1x64x128xf32> to vector<64x128xf32>
    %30 = arith.cmpf ogt, %29, %17 : vector<64x128xf32>
    %31 = arith.select %30, %29, %17 : vector<64x128xi1>, vector<64x128xf32>
    %c2_i32 = arith.constant 2 : i32
    %32 = vector.broadcast %c2_i32 : i32 to vector<64x128xi32>
    %33 = arith.select %30, %32, %19 : vector<64x128xi1>, vector<64x128xi32>
    %c2_12 = arith.constant 2 : index
    %34 = arith.index_cast %4 : i32 to index
    %c0_13 = arith.constant 0 : index
    %35 = vector.load %arg3[%c2_12, %34, %c0_13] : memref<4x64x128xf32, #tpu.memory_space<vmem>>, vector<1x64x128xf32>
    %36 = vector.shape_cast %35 : vector<1x64x128xf32> to vector<64x128xf32>
    %37 = arith.cmpf ogt, %36, %24 : vector<64x128xf32>
    %38 = arith.select %37, %36, %24 : vector<64x128xi1>, vector<64x128xf32>
    %c2_i32_14 = arith.constant 2 : i32
    %39 = vector.broadcast %c2_i32_14 : i32 to vector<64x128xi32>
    %40 = arith.select %37, %39, %26 : vector<64x128xi1>, vector<64x128xi32>
    %c3 = arith.constant 3 : index
    %41 = arith.index_cast %4 : i32 to index
    %c0_15 = arith.constant 0 : index
    %42 = vector.load %arg2[%c3, %41, %c0_15] : memref<4x64x128xf32, #tpu.memory_space<vmem>>, vector<1x64x128xf32>
    %43 = vector.shape_cast %42 : vector<1x64x128xf32> to vector<64x128xf32>
    %44 = arith.cmpf ogt, %43, %31 : vector<64x128xf32>
    %c3_i32 = arith.constant 3 : i32
    %45 = vector.broadcast %c3_i32 : i32 to vector<64x128xi32>
    %46 = arith.select %44, %45, %33 : vector<64x128xi1>, vector<64x128xi32>
    %c3_16 = arith.constant 3 : index
    %47 = arith.index_cast %4 : i32 to index
    %c0_17 = arith.constant 0 : index
    %48 = vector.load %arg3[%c3_16, %47, %c0_17] : memref<4x64x128xf32, #tpu.memory_space<vmem>>, vector<1x64x128xf32>
    %49 = vector.shape_cast %48 : vector<1x64x128xf32> to vector<64x128xf32>
    %50 = arith.cmpf ogt, %49, %38 : vector<64x128xf32>
    %c3_i32_18 = arith.constant 3 : i32
    %51 = vector.broadcast %c3_i32_18 : i32 to vector<64x128xi32>
    %52 = arith.select %50, %51, %40 : vector<64x128xi1>, vector<64x128xi32>
    %53 = arith.cmpi ne, %46, %52 : vector<64x128xi32>
    %54 = arith.extui %53 : vector<64x128xi1> to vector<64x128xi32>
    %55 = arith.sitofp %54 : vector<64x128xi32> to vector<64x128xf32>
    %56 = arith.index_cast %4 : i32 to index
    %c0_19 = arith.constant 0 : index
    %57 = vector.load %arg4[%56, %c0_19] : memref<64x128xf32, #tpu.memory_space<vmem>>, vector<64x128xf32>
    %58 = arith.subf %55, %57 : vector<64x128xf32>
    %59 = math.absf %58 : vector<64x128xf32>
    %c0_20 = arith.constant 0 : index
    %c0_21 = arith.constant 0 : index
    %60 = vector.load %arg6[%c0_20, %c0_21] : memref<8x128xf32, #tpu.memory_space<vmem>>, vector<8x128xf32>
    %61 = vector.shape_cast %59 : vector<64x128xf32> to vector<8x8x128xf32>
    %cst = arith.constant dense<0.000000e+00> : vector<8x128xf32>
    %62 = vector.multi_reduction <add>, %61, %cst [0] : vector<8x8x128xf32> to vector<8x128xf32>
    %63 = arith.addf %60, %62 : vector<8x128xf32>
    %c0_22 = arith.constant 0 : index
    %c0_23 = arith.constant 0 : index
    %64 = vector.load %arg6[%c0_22, %c0_23] : memref<8x128xf32, #tpu.memory_space<vmem>>, vector<8x128xf32>
    tpu.vector_store %arg6[%c0_22, %c0_23], %63 {strides = array<i32>} : memref<8x128xf32, #tpu.memory_space<vmem>>, vector<8x128xf32>,
    %c1_i32_24 = arith.constant 1 : i32
    %c0_i32_25 = arith.constant 0 : i32
    %65 = arith.cmpi eq, %arg1, %c0_i32_25 : i32
    %66 = arith.extui %65 : i1 to i32
    %c0_i32_26 = arith.constant 0 : i32
    %67 = arith.cmpi ne, %66, %c0_i32_26 : i32
    scf.if %67 {
      %c0_27 = arith.constant 0 : index
      %c0_28 = arith.constant 0 : index
      %68 = vector.load %arg6[%c0_27, %c0_28] : memref<8x128xf32, #tpu.memory_space<vmem>>, vector<8x128xf32>
      %c0_29 = arith.constant 0 : index
      %c0_30 = arith.constant 0 : index
      %c0_31 = arith.constant 0 : index
      %69 = vector.load %arg5[%c0_29, %c0_30, %c0_31] : memref<1x8x128xf32, #tpu.memory_space<vmem>>, vector<1x8x128xf32>
      %70 = vector.shape_cast %69 : vector<1x8x128xf32> to vector<8x128xf32>
      %71 = vector.shape_cast %68 : vector<8x128xf32> to vector<1x8x128xf32>
      tpu.vector_store %arg5[%c0_29, %c0_30, %c0_31], %71 {strides = array<i32>} : memref<1x8x128xf32, #tpu.memory_space<vmem>>, vector<1x8x128xf32>,
    } else {
    }
    return
  }
  func.func @transform_0(%arg0: i32, %arg1: i32) -> (i32, i32, i32) {
    %c1_i32 = arith.constant 1 : i32
    %0 = arith.muli %arg0, %c1_i32 : i32
    %1 = arith.addi %0, %arg1 : i32
    %c0_i32 = arith.constant 0 : i32
    %2 = arith.minsi %1, %c0_i32 : i32
    %c0_i32_0 = arith.constant 0 : i32
    %c0_i32_1 = arith.constant 0 : i32
    %c0_i32_2 = arith.constant 0 : i32
    return %c0_i32_0, %2, %c0_i32_1 : i32, i32, i32
  }
  func.func @transform_1(%arg0: i32, %arg1: i32) -> (i32, i32, i32) {
    %c1_i32 = arith.constant 1 : i32
    %0 = arith.muli %arg0, %c1_i32 : i32
    %1 = arith.addi %0, %arg1 : i32
    %c0_i32 = arith.constant 0 : i32
    %2 = arith.minsi %1, %c0_i32 : i32
    %c0_i32_0 = arith.constant 0 : i32
    %c0_i32_1 = arith.constant 0 : i32
    %c0_i32_2 = arith.constant 0 : i32
    return %c0_i32_0, %2, %c0_i32_1 : i32, i32, i32
  }
  func.func @transform_2(%arg0: i32, %arg1: i32) -> (i32, i32) {
    %c1_i32 = arith.constant 1 : i32
    %0 = arith.muli %arg0, %c1_i32 : i32
    %1 = arith.addi %0, %arg1 : i32
    %c0_i32 = arith.constant 0 : i32
    %2 = arith.minsi %1, %c0_i32 : i32
    %c0_i32_0 = arith.constant 0 : i32
    %c0_i32_1 = arith.constant 0 : i32
    return %2, %c0_i32_0 : i32, i32
  }
  func.func @transform_3(%arg0: i32, %arg1: i32) -> (i32, i32, i32) {
    %c0_i32 = arith.constant 0 : i32
    %c0_i32_0 = arith.constant 0 : i32
    %c0_i32_1 = arith.constant 0 : i32
    return %arg0, %c0_i32, %c0_i32_0 : i32, i32, i32
  }
}

</mosaic_0001>

<llo_original>
// kernel: fault_detector_loss.1
$region0: #{fault_detector_loss.1}
  #allocation0 [shape = 'u32[]', space=smem, size = 0x4, offset = 0x4, fixed_abs, tag = 'smem constant byte address 0x4 - core index']
  #allocation1 [shape = 'u32[144,128]{1,0:T(1,128)}', space=vmem, size = 0x12000, scoped, tag = 'internal scratch']
  #allocation2 [shape = 'f32[8,128]{1,0:T(8,128)}', space=vmem, size = 0x1000, scoped, tag = 'scratch operand']
  %s0 = inlined_call_operand.vmem [shape: f32[4,64,128], index: 0, kind: input, shape index: {}]
  %s1 = inlined_call_operand.vmem [shape: f32[4,64,128], index: 1, kind: input, shape index: {}]
  %s2 = inlined_call_operand.vmem [shape: f32[64,128], index: 2, kind: input, shape index: {}]
  %s3 = inlined_call_operand.vmem [shape: f32[1,8,128], index: 3, kind: output, shape index: {}]
  %s4 = sld [smem:[#allocation0]]
  $region30: #{fault_detector_loss.1} parent=0
    _
  %s6 = ssub.s32 1, %s4
  %s7 = scalar_select 0, %s6, %s4
  // Predicated region
  $region2: #{fault_detector_loss.1} parent=0 // pred_check
    _
  $region3: #{fault_detector_loss.1} parent=0 // pred_check_branch
    %9 = sbr.rel (0) target = $region5
  $region4: #{fault_detector_loss.1} parent=0 // pred_region
    %s10 = sadd.s32 0, 0
    %p11 = scmp.lt.s32.totalorder %s10, 0
    %s12 = scalar_select %p11, %s10, 0
    %s13 = smul.u32 8, %s12
    %p14 = scmp.lt.s32.totalorder %s13, 7
    %s15 = scalar_select %p14, %s13, 7
    %s16 = smul.addr %s15, 8
    %s17 = scalar_lea.vmem %s0, %s16
    %s18 = sadd.s32 0, 0
    %p19 = scmp.lt.s32.totalorder %s18, 0
    %s20 = scalar_select %p19, %s18, 0
    %s21 = smul.u32 8, %s20
  $region5: #{fault_detector_loss.1} parent=0 // pred_fallthru
    _
  // Predicated region
  $region6: #{fault_detector_loss.1} parent=0 // pred_check
    _
  $region7: #{fault_detector_loss.1} parent=0 // pred_check_branch
    %23 = sbr.rel (0) target = $region9
  $region8: #{fault_detector_loss.1} parent=0 // pred_region
    %s24 = sadd.s32 0, 0
    %p25 = scmp.lt.s32.totalorder %s24, 0
    %s26 = scalar_select %p25, %s24, 0
    %s27 = smul.u32 8, %s26
    %p28 = scmp.lt.s32.totalorder %s27, 7
    %s29 = scalar_select %p28, %s27, 7
    %s30 = smul.addr %s29, 8
    %s31 = scalar_lea.vmem %s1, %s30
    %s32 = sadd.s32 0, 0
    %p33 = scmp.lt.s32.totalorder %s32, 0
    %s34 = scalar_select %p33, %s32, 0
    %s35 = smul.u32 8, %s34
  $region9: #{fault_detector_loss.1} parent=0 // pred_fallthru
    _
  // Predicated region
  $region10: #{fault_detector_loss.1} parent=0 // pred_check
    _
  $region11: #{fault_detector_loss.1} parent=0 // pred_check_branch
    %37 = sbr.rel (0) target = $region13
  $region12: #{fault_detector_loss.1} parent=0 // pred_region
    %s38 = sadd.s32 0, 0
    %p39 = scmp.lt.s32.totalorder %s38, 0
    %s40 = scalar_select %p39, %s38, 0
    %s41 = smul.u32 8, %s40
    %p42 = scmp.lt.s32.totalorder %s41, 7
    %s43 = scalar_select %p42, %s41, 7
    %s44 = smul.addr %s43, 8
    %s45 = scalar_lea.vmem %s2, %s44
    %s46 = sadd.s32 0, 0
    %p47 = scmp.lt.s32.totalorder %s46, 0
    %s48 = scalar_select %p47, %s46, 0
    %s49 = smul.u32 8, %s48
  $region13: #{fault_detector_loss.1} parent=0 // pred_fallthru
    _
  %s50 = sadd.s32 0, 0
  %p51 = scmp.lt.s32.totalorder %s50, 0
  %s52 = scalar_select %p51, %s50, 0
  %s53 = smul.u32 8, %s52
  %p54 = scmp.lt.s32.totalorder %s53, 7
  %s55 = scalar_select %p54, %s53, 7
  %s56 = smul.addr %s55, 8
  %s57 = scalar_lea.vmem %s0, %s56
  %s58 = sadd.s32 0, 0
  %p59 = scmp.lt.s32.totalorder %s58, 0
  %s60 = scalar_select %p59, %s58, 0
  %s61 = smul.u32 8, %s60
  %p62 = scmp.lt.s32.totalorder %s61, 7
  %s63 = scalar_select %p62, %s61, 7
  %s64 = smul.addr %s63, 8
  %s65 = scalar_lea.vmem %s1, %s64
  %s66 = sadd.s32 0, 0
  %p67 = scmp.lt.s32.totalorder %s66, 0
  %s68 = scalar_select %p67, %s66, 0
  %s69 = smul.u32 8, %s68
  %p70 = scmp.lt.s32.totalorder %s69, 7
  %s71 = scalar_select %p70, %s69, 7
  %s72 = smul.addr %s71, 8
  %s73 = scalar_lea.vmem %s2, %s72
  %s74 = sadd.s32 0, 0
  %p75 = scmp.lt.s32.totalorder %s74, 0
  %s76 = scalar_select %p75, %s74, 0
  %s77 = smul.u32 8, %s76
  %p78 = scmp.lt.s32.totalorder %s77, 7
  %s79 = scalar_select %p78, %s77, 7
  %s80 = smul.addr %s79, 8
  %s81 = scalar_lea.vmem %s0, %s80
  %s82 = sadd.s32 0, 0
  %p83 = scmp.lt.s32.totalorder %s82, 0
  %s84 = scalar_select %p83, %s82, 0
  %s85 = smul.u32 8, %s84
  %s86 = sadd.s32 0, 0
  %p87 = scmp.lt.s32.totalorder %s86, 0
  %s88 = scalar_select %p87, %s86, 0
  %s89 = smul.u32 8, %s88
  %p90 = scmp.lt.s32.totalorder %s89, 7
  %s91 = scalar_select %p90, %s89, 7
  %s92 = smul.addr %s91, 8
  %s93 = scalar_lea.vmem %s1, %s92
  %s94 = sadd.s32 0, 0
  %p95 = scmp.lt.s32.totalorder %s94, 0
  %s96 = scalar_select %p95, %s94, 0
  %s97 = smul.u32 8, %s96
  %s98 = sadd.s32 0, 0
  %p99 = scmp.lt.s32.totalorder %s98, 0
  %s100 = scalar_select %p99, %s98, 0
  %s101 = smul.u32 8, %s100
  %p102 = scmp.lt.s32.totalorder %s101, 7
  %s103 = scalar_select %p102, %s101, 7
  %s104 = smul.addr %s103, 8
  %s105 = scalar_lea.vmem %s2, %s104
  %s106 = sadd.s32 0, 0
  %p107 = scmp.lt.s32.totalorder %s106, 0
  %s108 = scalar_select %p107, %s106, 0
  %s109 = smul.u32 8, %s108
  %p110 = scmp.eq.s32.totalorder 0, 0
  // Predicated region
  $region14: #{fault_detector_loss.1} parent=0 // pred_check
    %p111 = pneg %p110
  $region15: #{fault_detector_loss.1} parent=0 // pred_check_branch
    %113 = sbr.rel (%p111) target = $region17
  $region16: #{fault_detector_loss.1} parent=0 // pred_region
    %114 = vst [vmem:[#allocation2] sm:$0xff] 0.0
  $region17: #{fault_detector_loss.1} parent=0 // pred_fallthru
    _
  %v115 = vld [vmem:[%s81] sm:$0xff]
  %v116 = vld [vmem:[%s81 + $0x8] sm:$0xff]
  %v117 = vld [vmem:[%s81 + $0x10] sm:$0xff]
  %v118 = vld [vmem:[%s81 + $0x18] sm:$0xff]
  %v119 = vld [vmem:[%s81 + $0x20] sm:$0xff]
  %v120 = vld [vmem:[%s81 + $0x28] sm:$0xff]
  %v121 = vld [vmem:[%s81 + $0x30] sm:$0xff]
  %v122 = vld [vmem:[%s81 + $0x38] sm:$0xff]
  %v123 = vld [vmem:[%s93] sm:$0xff]
  %v124 = vld [vmem:[%s93 + $0x8] sm:$0xff]
  %v125 = vld [vmem:[%s93 + $0x10] sm:$0xff]
  %v126 = vld [vmem:[%s93 + $0x18] sm:$0xff]
  %v127 = vld [vmem:[%s93 + $0x20] sm:$0xff]
  %v128 = vld [vmem:[%s93 + $0x28] sm:$0xff]
  %v129 = vld [vmem:[%s93 + $0x30] sm:$0xff]
  %v130 = vld [vmem:[%s93 + $0x38] sm:$0xff]
  %s131 = sadd.s32 0, 64
  %s132 = scalar_lea.vmem %s81, %s131
  %v133 = vld [vmem:[%s132] sm:$0xff]
  %v134 = vld [vmem:[%s132 + $0x8] sm:$0xff]
  %v135 = vld [vmem:[%s132 + $0x10] sm:$0xff]
  %v136 = vld [vmem:[%s132 + $0x18] sm:$0xff]
  %v137 = vld [vmem:[%s132 + $0x20] sm:$0xff]
  %v138 = vld [vmem:[%s132 + $0x28] sm:$0xff]
  %v139 = vld [vmem:[%s132 + $0x30] sm:$0xff]
  %v140 = vld [vmem:[%s132 + $0x38] sm:$0xff]
  %vm141 = vcmp.gt.f32.partialorder %v133, %v115
  %vm142 = vcmp.gt.f32.partialorder %v134, %v116
  %vm143 = vcmp.gt.f32.partialorder %v135, %v117
  %vm144 = vcmp.gt.f32.partialorder %v136, %v118
  %vm145 = vcmp.gt.f32.partialorder %v137, %v119
  %vm146 = vcmp.gt.f32.partialorder %v138, %v120
  %vm147 = vcmp.gt.f32.partialorder %v139, %v121
  %vm148 = vcmp.gt.f32.partialorder %v140, %v122
  %v149 = vsel %vm141, %v133, %v115
  %v150 = vsel %vm142, %v134, %v116
  %v151 = vsel %vm143, %v135, %v117
  %v152 = vsel %vm144, %v136, %v118
  %v153 = vsel %vm145, %v137, %v119
  %v154 = vsel %vm146, %v138, %v120
  %v155 = vsel %vm147, %v139, %v121
  %v156 = vsel %vm148, %v140, %v122
  %v157 = vsel %vm141, 1, 0
  %v158 = vsel %vm142, 1, 0
  %v159 = vsel %vm143, 1, 0
  %v160 = vsel %vm144, 1, 0
  %v161 = vsel %vm145, 1, 0
  %v162 = vsel %vm146, 1, 0
  %v163 = vsel %vm147, 1, 0
  %v164 = vsel %vm148, 1, 0
  %s165 = scalar_lea.vmem %s93, %s131
  %v166 = vld [vmem:[%s165] sm:$0xff]
  %v167 = vld [vmem:[%s165 + $0x8] sm:$0xff]
  %v168 = vld [vmem:[%s165 + $0x10] sm:$0xff]
  %v169 = vld [vmem:[%s165 + $0x18] sm:$0xff]
  %v170 = vld [vmem:[%s165 + $0x20] sm:$0xff]
  %v171 = vld [vmem:[%s165 + $0x28] sm:$0xff]
  %v172 = vld [vmem:[%s165 + $0x30] sm:$0xff]
  %v173 = vld [vmem:[%s165 + $0x38] sm:$0xff]
  %vm174 = vcmp.gt.f32.partialorder %v166, %v123
  %vm175 = vcmp.gt.f32.partialorder %v167, %v124
  %vm176 = vcmp.gt.f32.partialorder %v168, %v125
  %vm177 = vcmp.gt.f32.partialorder %v169, %v126
  %vm178 = vcmp.gt.f32.partialorder %v170, %v127
  %vm179 = vcmp.gt.f32.partialorder %v171, %v128
  %vm180 = vcmp.gt.f32.partialorder %v172, %v129
  %vm181 = vcmp.gt.f32.partialorder %v173, %v130
  %v182 = vsel %vm174, %v166, %v123
  %v183 = vsel %vm175, %v167, %v124
  %v184 = vsel %vm176, %v168, %v125
  %v185 = vsel %vm177, %v169, %v126
  %v186 = vsel %vm178, %v170, %v127
  %v187 = vsel %vm179, %v171, %v128
  %v188 = vsel %vm180, %v172, %v129
  %v189 = vsel %vm181, %v173, %v130
  %v190 = vsel %vm174, 1, 0
  %v191 = vsel %vm175, 1, 0
  %v192 = vsel %vm176, 1, 0
  %v193 = vsel %vm177, 1, 0
  %v194 = vsel %vm178, 1, 0
  %v195 = vsel %vm179, 1, 0
  %v196 = vsel %vm180, 1, 0
  %v197 = vsel %vm181, 1, 0
  %s198 = sadd.s32 0, 128
  %s199 = scalar_lea.vmem %s81, %s198
  %v200 = vld [vmem:[%s199] sm:$0xff]
  %v201 = vld [vmem:[%s199 + $0x8] sm:$0xff]
  %v202 = vld [vmem:[%s199 + $0x10] sm:$0xff]
  %v203 = vld [vmem:[%s199 + $0x18] sm:$0xff]
  %v204 = vld [vmem:[%s199 + $0x20] sm:$0xff]
  %v205 = vld [vmem:[%s199 + $0x28] sm:$0xff]
  %v206 = vld [vmem:[%s199 + $0x30] sm:$0xff]
  %v207 = vld [vmem:[%s199 + $0x38] sm:$0xff]
  %vm208 = vcmp.gt.f32.partialorder %v200, %v149
  %vm209 = vcmp.gt.f32.partialorder %v201, %v150
  %vm210 = vcmp.gt.f32.partialorder %v202, %v151
  %vm211 = vcmp.gt.f32.partialorder %v203, %v152
  %vm212 = vcmp.gt.f32.partialorder %v204, %v153
  %vm213 = vcmp.gt.f32.partialorder %v205, %v154
  %vm214 = vcmp.gt.f32.partialorder %v206, %v155
  %vm215 = vcmp.gt.f32.partialorder %v207, %v156
  %v216 = vsel %vm208, %v200, %v149
  %v217 = vsel %vm209, %v201, %v150
  %v218 = vsel %vm210, %v202, %v151
  %v219 = vsel %vm211, %v203, %v152
  %v220 = vsel %vm212, %v204, %v153
  %v221 = vsel %vm213, %v205, %v154
  %v222 = vsel %vm214, %v206, %v155
  %v223 = vsel %vm215, %v207, %v156
  %v224 = vsel %vm208, 2, %v157
  %v225 = vsel %vm209, 2, %v158
  %v226 = vsel %vm210, 2, %v159
  %v227 = vsel %vm211, 2, %v160
  %v228 = vsel %vm212, 2, %v161
  %v229 = vsel %vm213, 2, %v162
  %v230 = vsel %vm214, 2, %v163
  %v231 = vsel %vm215, 2, %v164
  %s232 = scalar_lea.vmem %s93, %s198
  %v233 = vld [vmem:[%s232] sm:$0xff]
  %v234 = vld [vmem:[%s232 + $0x8] sm:$0xff]
  %v235 = vld [vmem:[%s232 + $0x10] sm:$0xff]
  %v236 = vld [vmem:[%s232 + $0x18] sm:$0xff]
  %v237 = vld [vmem:[%s232 + $0x20] sm:$0xff]
  %v238 = vld [vmem:[%s232 + $0x28] sm:$0xff]
  %v239 = vld [vmem:[%s232 + $0x30] sm:$0xff]
  %v240 = vld [vmem:[%s232 + $0x38] sm:$0xff]
  %vm241 = vcmp.gt.f32.partialorder %v233, %v182
  %vm242 = vcmp.gt.f32.partialorder %v234, %v183
  %vm243 = vcmp.gt.f32.partialorder %v235, %v184
  %vm244 = vcmp.gt.f32.partialorder %v236, %v185
  %vm245 = vcmp.gt.f32.partialorder %v237, %v186
  %vm246 = vcmp.gt.f32.partialorder %v238, %v187
  %vm247 = vcmp.gt.f32.partialorder %v239, %v188
  %vm248 = vcmp.gt.f32.partialorder %v240, %v189
  %v249 = vsel %vm241, %v233, %v182
  %v250 = vsel %vm242, %v234, %v183
  %v251 = vsel %vm243, %v235, %v184
  %v252 = vsel %vm244, %v236, %v185
  %v253 = vsel %vm245, %v237, %v186
  %v254 = vsel %vm246, %v238, %v187
  %v255 = vsel %vm247, %v239, %v188
  %v256 = vsel %vm248, %v240, %v189
  %v257 = vsel %vm241, 2, %v190
  %v258 = vsel %vm242, 2, %v191
  %v259 = vsel %vm243, 2, %v192
  %v260 = vsel %vm244, 2, %v193
  %v261 = vsel %vm245, 2, %v194
  %v262 = vsel %vm246, 2, %v195
  %v263 = vsel %vm247, 2, %v196
  %v264 = vsel %vm248, 2, %v197
  %s265 = sadd.s32 0, 192
  %s266 = scalar_lea.vmem %s81, %s265
  %v267 = vld [vmem:[%s266] sm:$0xff]
  %v268 = vld [vmem:[%s266 + $0x8] sm:$0xff]
  %v269 = vld [vmem:[%s266 + $0x10] sm:$0xff]
  %v270 = vld [vmem:[%s266 + $0x18] sm:$0xff]
  %v271 = vld [vmem:[%s266 + $0x20] sm:$0xff]
  %v272 = vld [vmem:[%s266 + $0x28] sm:$0xff]
  %v273 = vld [vmem:[%s266 + $0x30] sm:$0xff]
  %v274 = vld [vmem:[%s266 + $0x38] sm:$0xff]
  %vm275 = vcmp.gt.f32.partialorder %v267, %v216
  %vm276 = vcmp.gt.f32.partialorder %v268, %v217
  %vm277 = vcmp.gt.f32.partialorder %v269, %v218
  %vm278 = vcmp.gt.f32.partialorder %v270, %v219
  %vm279 = vcmp.gt.f32.partialorder %v271, %v220
  %vm280 = vcmp.gt.f32.partialorder %v272, %v221
  %vm281 = vcmp.gt.f32.partialorder %v273, %v222
  %vm282 = vcmp.gt.f32.partialorder %v274, %v223
  %v283 = vsel %vm275, 3, %v224
  %v284 = vsel %vm276, 3, %v225
  %v285 = vsel %vm277, 3, %v226
  %v286 = vsel %vm278, 3, %v227
  %v287 = vsel %vm279, 3, %v228
  %v288 = vsel %vm280, 3, %v229
  %v289 = vsel %vm281, 3, %v230
  %v290 = vsel %vm282, 3, %v231
  %s291 = scalar_lea.vmem %s93, %s265
  %v292 = vld [vmem:[%s291] sm:$0xff]
  %v293 = vld [vmem:[%s291 + $0x8] sm:$0xff]
  %v294 = vld [vmem:[%s291 + $0x10] sm:$0xff]
  %v295 = vld [vmem:[%s291 + $0x18] sm:$0xff]
  %v296 = vld [vmem:[%s291 + $0x20] sm:$0xff]
  %v297 = vld [vmem:[%s291 + $0x28] sm:$0xff]
  %v298 = vld [vmem:[%s291 + $0x30] sm:$0xff]
  %v299 = vld [vmem:[%s291 + $0x38] sm:$0xff]
  %vm300 = vcmp.gt.f32.partialorder %v292, %v249
  %vm301 = vcmp.gt.f32.partialorder %v293, %v250
  %vm302 = vcmp.gt.f32.partialorder %v294, %v251
  %vm303 = vcmp.gt.f32.partialorder %v295, %v252
  %vm304 = vcmp.gt.f32.partialorder %v296, %v253
  %vm305 = vcmp.gt.f32.partialorder %v297, %v254
  %vm306 = vcmp.gt.f32.partialorder %v298, %v255
  %vm307 = vcmp.gt.f32.partialorder %v299, %v256
  %v308 = vsel %vm300, 3, %v257
  %v309 = vsel %vm301, 3, %v258
  %v310 = vsel %vm302, 3, %v259
  %v311 = vsel %vm303, 3, %v260
  %v312 = vsel %vm304, 3, %v261
  %v313 = vsel %vm305, 3, %v262
  %v314 = vsel %vm306, 3, %v263
  %v315 = vsel %vm307, 3, %v264
  %vm316 = vcmp.ne.s32.totalorder %v283, %v308
  %vm317 = vcmp.ne.s32.totalorder %v284, %v309
  %vm318 = vcmp.ne.s32.totalorder %v285, %v310
  %vm319 = vcmp.ne.s32.totalorder %v286, %v311
  %vm320 = vcmp.ne.s32.totalorder %v287, %v312
  %vm321 = vcmp.ne.s32.totalorder %v288, %v313
  %vm322 = vcmp.ne.s32.totalorder %v289, %v314
  %vm323 = vcmp.ne.s32.totalorder %v290, %v315
  %v324 = vsel %vm316, 1, 0
  %v325 = vsel %vm317, 1, 0
  %v326 = vsel %vm318, 1, 0
  %v327 = vsel %vm319, 1, 0
  %v328 = vsel %vm320, 1, 0
  %v329 = vsel %vm321, 1, 0
  %v330 = vsel %vm322, 1, 0
  %v331 = vsel %vm323, 1, 0
  %v332 = vcvt.s32.f32 %v324
  %v333 = vcvt.s32.f32 %v325
  %v334 = vcvt.s32.f32 %v326
  %v335 = vcvt.s32.f32 %v327
  %v336 = vcvt.s32.f32 %v328
  %v337 = vcvt.s32.f32 %v329
  %v338 = vcvt.s32.f32 %v330
  %v339 = vcvt.s32.f32 %v331
  %v340 = vld [vmem:[%s105] sm:$0xff]
  %v341 = vld [vmem:[%s105 + $0x8] sm:$0xff]
  %v342 = vld [vmem:[%s105 + $0x10] sm:$0xff]
  %v343 = vld [vmem:[%s105 + $0x18] sm:$0xff]
  %v344 = vld [vmem:[%s105 + $0x20] sm:$0xff]
  %v345 = vld [vmem:[%s105 + $0x28] sm:$0xff]
  %v346 = vld [vmem:[%s105 + $0x30] sm:$0xff]
  %v347 = vld [vmem:[%s105 + $0x38] sm:$0xff]
  %v348 = vsub.f32 %v332, %v340
  %v349 = vsub.f32 %v333, %v341
  %v350 = vsub.f32 %v334, %v342
  %v351 = vsub.f32 %v335, %v343
  %v352 = vsub.f32 %v336, %v344
  %v353 = vsub.f32 %v337, %v345
  %v354 = vsub.f32 %v338, %v346
  %v355 = vsub.f32 %v339, %v347
  %v356 = vand.u32 2147483647, %v348
  %v357 = vand.u32 2147483647, %v349
  %v358 = vand.u32 2147483647, %v350
  %v359 = vand.u32 2147483647, %v351
  %v360 = vand.u32 2147483647, %v352
  %v361 = vand.u32 2147483647, %v353
  %v362 = vand.u32 2147483647, %v354
  %v363 = vand.u32 2147483647, %v355
  %v364 = vld [vmem:[#allocation2] sm:$0xff]
  %v365 = vadd.f32 %v356, %v357
  %v366 = vadd.f32 %v365, %v358
  %v367 = vadd.f32 %v366, %v359
  %v368 = vadd.f32 %v367, %v360
  %v369 = vadd.f32 %v368, %v361
  %v370 = vadd.f32 %v369, %v362
  %v371 = vadd.f32 %v370, %v363
  %v372 = vadd.f32 %v364, %v371
  %373 = vst [vmem:[#allocation2] sm:$0xff] %v372
  // Predicated region
  $region18: #{fault_detector_loss.1} parent=0 // pred_check
    %p374 = pneg %p110
  $region19: #{fault_detector_loss.1} parent=0 // pred_check_branch
    %376 = sbr.rel (%p374) target = $region21
  $region20: #{fault_detector_loss.1} parent=0 // pred_region
    %v377 = vld [vmem:[#allocation2] sm:$0xff]
    %378 = vst [vmem:[%s3] sm:$0xff] %v377
  $region21: #{fault_detector_loss.1} parent=0 // pred_fallthru
    _
  // Predicated region
  $region22: #{fault_detector_loss.1} parent=0 // pred_check
    _
  $region23: #{fault_detector_loss.1} parent=0 // pred_check_branch
    %380 = sbr.rel (0) target = $region25
  $region24: #{fault_detector_loss.1} parent=0 // pred_region
    _
  $region25: #{fault_detector_loss.1} parent=0 // pred_fallthru
    _
  // Predicated region
  $region26: #{fault_detector_loss.1} parent=0 // pred_check
    _
  $region27: #{fault_detector_loss.1} parent=0 // pred_check_branch
    %382 = sbr.rel (0) target = $region29
  $region28: #{fault_detector_loss.1} parent=0 // pred_region
    _
  $region29: #{fault_detector_loss.1} parent=0 // pred_fallthru
    _

</llo_original>
